<compile_context>
chip_gen: v7x
topology: tpu7x:2x2x1
jax: 0.10.0
libtpu: 0.0.40
codegen_flags: <defaults>
</compile_context>

<pallas_src>
import functools

import numpy as np
import jax
import jax.numpy as jnp
from jax.experimental import pallas as pl
from jax.experimental.pallas import tpu as pltpu


def _round_up(x, m):
    return ((x + m - 1) // m) * m


def _cdiv(a, b):
    return -(-a // b)


# ---------------------------------------------------------------------------
# Kernel: one fused real matmul per grid point.
#   x_ref: (TILE_M, 2N)        interleaved [re, im] input columns
#   w_ref: (2N, TILE_N)        interleaved weight block
#   o_ref: (TILE_M, TILE_N)    interleaved [re, im] output columns (f32)
# ---------------------------------------------------------------------------
def _ofdm_mod_kernel(x_ref, w_ref, o_ref):
    o_ref[...] = jnp.dot(x_ref[...], w_ref[...],
                         preferred_element_type=jnp.float32)


@functools.lru_cache(maxsize=None)
def _build_w2(fft_size, cp, out_cols_pad, use_bf16=False):
    """ifftshift + normalized IDFT + cyclic prefix folded into one real matrix.

    Rows are ordered to match the interleaved [re, im] column layout obtained
    by bitcasting complex64 inputs to float32; output columns are likewise
    interleaved [re, im] pairs so the kernel output bitcasts straight back to
    complex64.  Only one zero-padding region (total width rounded up)."""
    N = fft_size
    n_idx = np.arange(N)
    F = np.exp(2j * np.pi * np.outer(n_idx, n_idx) / N) / np.sqrt(N)   # (N, N)
    perm = np.fft.ifftshift(np.arange(N))      # ifftshift(X)[m] = X[perm[m]]
    inv = np.argsort(perm)                     # perm^{-1}
    W = F[inv, :]                              # x_time = X_freq @ W
    # Cyclic prefix folded in: output cols = [last cp | all N].
    W_aug = np.concatenate([W[:, N - cp:], W], axis=1)                 # (N, N+cp)
    out_len = N + cp
    Wr, Wi = np.real(W_aug), np.imag(W_aug)

    W2 = np.zeros((2 * N, out_cols_pad), dtype=np.float32)
    # y_re[m] = sum_k xr_k*Wr[k,m] - xi_k*Wi[k,m]
    # y_im[m] = sum_k xr_k*Wi[k,m] + xi_k*Wr[k,m]
    W2[0::2, 0:2 * out_len:2] = Wr
    W2[1::2, 0:2 * out_len:2] = -Wi
    W2[0::2, 1:2 * out_len:2] = Wi
    W2[1::2, 1:2 * out_len:2] = Wr

    dt = jnp.bfloat16 if use_bf16 else jnp.float32
    return jnp.asarray(W2, dtype=dt)


def _vmem_budget_bytes():
    """~80% of physical VMEM (generation-aware), with a safe fallback."""
    try:
        info = pltpu.get_tpu_info()
        cap = int(getattr(info, "vmem_capacity_bytes", 0)) or (64 << 20)
    except Exception:
        cap = 64 << 20
    return int(0.8 * cap)


def _need_bytes(tile_m, tile_n, K, w_buf, in_bytes):
    # w (w_buf buffers) + x (double-buffered) + out (double-buffered, f32) + headroom
    return (w_buf * K * tile_n + 2 * tile_m * K) * in_bytes \
        + 2 * tile_m * tile_n * 4 + (2 << 20)


def _plan_tiles(M, K, out_cols, in_bytes, budget):
    """Pick (TILE_M, TILE_N, n_col_splits) that fit the VMEM budget."""
    # Output-column tiling: only engaged when W2 cannot be VMEM-resident.
    n_splits = 1
    while True:
        tile_n = _round_up(_cdiv(out_cols, n_splits), 128)
        w_buf = 1 if n_splits == 1 else 2
        if _need_bytes(128, tile_n, K, w_buf, in_bytes) <= budget or tile_n <= 512:
            break
        n_splits *= 2

    # M tiling: biggest tile that fits, but keep >=2 M-tiles (and no gross row
    # padding) so the grid can shard across both TensorCores on v7x.
    if M <= 128:
        tile_m = max(8, _round_up(M, 8))
    else:
        tile_m = 128
        for tm in (512, 256):
            if (_need_bytes(tm, tile_n, K, w_buf, in_bytes) <= budget
                    and M >= 2 * tm):
                tile_m = tm
                break
    return tile_m, tile_n, n_splits


def ofdm_modulator(x_complex, cyclic_prefix_length=0, use_bf16=False):
    """x_complex: [..., num_ofdm_symbols, fft_size] complex64
       returns  : [..., num_ofdm_symbols*(fft_size+cp)] complex64"""
    cp = int(cyclic_prefix_length)
    *batch, S, N = x_complex.shape
    assert 0 <= cp <= N, "`cyclic_prefix_length` must be in [0, fft_size]"

    out_len = N + cp
    out_cols = 2 * out_len
    K = 2 * N
    B = int(np.prod(batch)) if batch else 1
    M = B * S

    in_bytes = 2 if use_bf16 else 4
    budget = _vmem_budget_bytes()
    TILE_M, TILE_N, n_splits = _plan_tiles(M, K, out_cols, in_bytes, budget)
    OUT2 = n_splits * TILE_N
    M_pad = _round_up(M, TILE_M)
    grid_m = M_pad // TILE_M
    grid_n = n_splits

    # ---- input: complex64 -> interleaved [re, im] f32 columns.
    # Zero-copy bitcast when supported; otherwise one fused stack pass.
    x_complex = jnp.asarray(x_complex, dtype=jnp.complex64)
    try:
        x2 = jax.lax.bitcast_convert_type(x_complex, jnp.float32)  # (..., N, 2)
    except Exception:
        x2 = jnp.stack([jnp.real(x_complex), jnp.imag(x_complex)], axis=-1)
    x2 = x2.reshape(M, K)
    if use_bf16:
        x2 = x2.astype(jnp.bfloat16)
    if M_pad != M:
        x2 = jnp.pad(x2, ((0, M_pad - M), (0, 0)))

    w2 = _build_w2(N, cp, OUT2, use_bf16)                            # (2N, OUT2)

    # ---- grid ordering: minimize re-read HBM traffic when columns are tiled.
    x_bytes_total = M_pad * K * in_bytes
    w_bytes_total = K * OUT2 * in_bytes
    m_outer = (grid_n == 1) or ((grid_m - 1) * w_bytes_total
                                <= (grid_n - 1) * x_bytes_total)
    if m_outer:
        grid = (grid_m, grid_n)
        x_map = lambda i, j: (i, 0)
        w_map = lambda i, j: (0, j)
        o_map = lambda i, j: (i, j)
    else:
        grid = (grid_n, grid_m)
        x_map = lambda j, i: (i, 0)
        w_map = lambda j, i: (0, j)
        o_map = lambda j, i: (i, j)

    def _call(single_buffer_w):
        w_buf = 1 if single_buffer_w else 2
        vmem_limit = int(min(max(_need_bytes(TILE_M, TILE_N, K, w_buf, in_bytes),
                                 4 << 20), budget))
        if single_buffer_w:
            w_spec = pl.BlockSpec((K, TILE_N), w_map, pipeline_mode=pl.Buffered(1))
        else:
            w_spec = pl.BlockSpec((K, TILE_N), w_map)
        return pl.pallas_call(
            _ofdm_mod_kernel,
            out_shape=jax.ShapeDtypeStruct((M_pad, OUT2), jnp.float32),
            grid_spec=pltpu.PrefetchScalarGridSpec(
                num_scalar_prefetch=0,
                grid=grid,
                in_specs=[pl.BlockSpec((TILE_M, K), x_map), w_spec],
                out_specs=pl.BlockSpec((TILE_M, TILE_N), o_map),
            ),
            compiler_params=pltpu.CompilerParams(
                dimension_semantics=("parallel", "parallel"),
                vmem_limit_bytes=vmem_limit,
            ),
        )(x2, w2)

    # The weight block index is constant when there is no column tiling, so it
    # only needs a single VMEM buffer; fall back gracefully if the installed
    # Pallas rejects pipeline_mode / Buffered(1).
    use_single = (grid_n == 1)
    try:
        out = _call(use_single)
    except Exception:
        if not use_single:
            raise
        out = _call(False)

    # ---- output: drop row/column padding, bitcast interleaved f32 -> complex64.
    y2 = out[:M, :out_cols].reshape(M, out_len, 2)
    try:
        y = jax.lax.bitcast_convert_type(y2, jnp.complex64)         # (M, out_len)
    except Exception:
        y = (y2[..., 0] + 1j * y2[..., 1]).astype(jnp.complex64)
    y = y.reshape(*batch, S * out_len)                               # flatten last 2 dims
    return y


if __name__ == "__main__":
    # small shapes consistent with the module: [batch, num_ofdm_symbols, fft_size]
    batch, num_ofdm_symbols, fft_size = 2, 8, 16
    cyclic_prefix_length = 4

    key = jax.random.PRNGKey(0)
    kr, ki = jax.random.split(key)
    xr = jax.random.normal(kr, (batch, num_ofdm_symbols, fft_size), dtype=jnp.float32)
    xi = jax.random.normal(ki, (batch, num_ofdm_symbols, fft_size), dtype=jnp.float32)
    x = (xr + 1j * xi).astype(jnp.complex64)

    y = ofdm_modulator(x, cyclic_prefix_length)
    y = jax.block_until_ready(y)

    # plain-JAX reference (mirrors the PyTorch forward)
    x_shift = jnp.fft.ifftshift(x, axes=-1)
    xt = jnp.sqrt(jnp.asarray(fft_size, jnp.float32)) * jnp.fft.ifft(x_shift, axis=-1)
    cp_part = xt[..., fft_size - cyclic_prefix_length:]
    ref = jnp.concatenate([cp_part, xt], axis=-1)
    ref = ref.reshape(batch, num_ofdm_symbols * (fft_size + cyclic_prefix_length))

    assert y.shape == (batch, num_ofdm_symbols * (fft_size + cyclic_prefix_length))
    np.testing.assert_allclose(np.asarray(y), np.asarray(ref), rtol=1e-4, atol=1e-4)
    print("KERNEL_OK")
</pallas_src>

<mosaic_0001>
module attributes {stable_mosaic.version = 11 : i64} {
  func.func @_ofdm_mod_kernel(%arg0: i32, %arg1: i32, %arg2: memref<16x32xf32, #tpu.memory_space<vmem>>, %arg3: memref<32x128xf32, #tpu.memory_space<vmem>>, %arg4: memref<16x128xf32, #tpu.memory_space<vmem>>) attributes {dimension_semantics = [#tpu.dimension_semantics<parallel>, #tpu.dimension_semantics<parallel>], iteration_bounds = array<i64: 1, 1>, scalar_prefetch = 0 : i64, scratch_operands = 0 : i64, tpu.core_type = #tpu.core_type<tc>, window_params = [{transform_indices = @transform_0, window_bounds = array<i64: 16, 32>}, {pipeline_mode = #tpu.pipeline_mode<synchronous>, transform_indices = @transform_1, window_bounds = array<i64: 32, 128>}, {transform_indices = @transform_2, window_bounds = array<i64: 16, 128>}]} {
    %c0 = arith.constant 0 : index
    %c0_0 = arith.constant 0 : index
    %0 = vector.load %arg2[%c0, %c0_0] : memref<16x32xf32, #tpu.memory_space<vmem>>, vector<16x32xf32>
    %c0_1 = arith.constant 0 : index
    %c0_2 = arith.constant 0 : index
    %1 = vector.load %arg3[%c0_1, %c0_2] : memref<32x128xf32, #tpu.memory_space<vmem>>, vector<32x128xf32>
    %cst = arith.constant dense<0.000000e+00> : vector<16x128xf32>
    %2 = tpu.matmul %0, %1, %cst {dimension_numbers = #tpu.dot_dimension_numbers<[1], [0], [0], [1], [0, 0, 1, 1], [], []>} : vector<16x32xf32>, vector<32x128xf32>, vector<16x128xf32> -> vector<16x128xf32>
    %c0_3 = arith.constant 0 : index
    %c0_4 = arith.constant 0 : index
    %3 = vector.load %arg4[%c0_3, %c0_4] : memref<16x128xf32, #tpu.memory_space<vmem>>, vector<16x128xf32>
    tpu.vector_store %arg4[%c0_3, %c0_4], %2 {strides = array<i32>} : memref<16x128xf32, #tpu.memory_space<vmem>>, vector<16x128xf32>,
    return
  }
  func.func @transform_0(%arg0: i32, %arg1: i32) -> (i32, i32) {
    %c0_i32 = arith.constant 0 : i32
    %c0_i32_0 = arith.constant 0 : i32
    return %arg0, %c0_i32 : i32, i32
  }
  func.func @transform_1(%arg0: i32, %arg1: i32) -> (i32, i32) {
    %c0_i32 = arith.constant 0 : i32
    %c0_i32_0 = arith.constant 0 : i32
    return %c0_i32, %arg1 : i32, i32
  }
  func.func @transform_2(%arg0: i32, %arg1: i32) -> (i32, i32) {
    %c0_i32 = arith.constant 0 : i32
    return %arg0, %arg1 : i32, i32
  }
}

module attributes {stable_mosaic.version = 11 : i64} {
  func.func @_ofdm_mod_kernel(%arg0: i32, %arg1: i32, %arg2: memref<16x32xf32, #tpu.memory_space<vmem>>, %arg3: memref<32x128xf32, #tpu.memory_space<vmem>>, %arg4: memref<16x128xf32, #tpu.memory_space<vmem>>) attributes {dimension_semantics = [#tpu.dimension_semantics<parallel>, #tpu.dimension_semantics<parallel>], iteration_bounds = array<i64: 1, 1>, scalar_prefetch = 0 : i64, scratch_operands = 0 : i64, tpu.core_type = #tpu.core_type<tc>, window_params = [{transform_indices = @transform_0, window_bounds = array<i64: 16, 32>}, {transform_indices = @transform_1, window_bounds = array<i64: 32, 128>}, {transform_indices = @transform_2, window_bounds = array<i64: 16, 128>}]} {
    %c0 = arith.constant 0 : index
    %c0_0 = arith.constant 0 : index
    %0 = vector.load %arg2[%c0, %c0_0] : memref<16x32xf32, #tpu.memory_space<vmem>>, vector<16x32xf32>
    %c0_1 = arith.constant 0 : index
    %c0_2 = arith.constant 0 : index
    %1 = vector.load %arg3[%c0_1, %c0_2] : memref<32x128xf32, #tpu.memory_space<vmem>>, vector<32x128xf32>
    %cst = arith.constant dense<0.000000e+00> : vector<16x128xf32>
    %2 = tpu.matmul %0, %1, %cst {dimension_numbers = #tpu.dot_dimension_numbers<[1], [0], [0], [1], [0, 0, 1, 1], [], []>} : vector<16x32xf32>, vector<32x128xf32>, vector<16x128xf32> -> vector<16x128xf32>
    %c0_3 = arith.constant 0 : index
    %c0_4 = arith.constant 0 : index
    %3 = vector.load %arg4[%c0_3, %c0_4] : memref<16x128xf32, #tpu.memory_space<vmem>>, vector<16x128xf32>
    tpu.vector_store %arg4[%c0_3, %c0_4], %2 {strides = array<i32>} : memref<16x128xf32, #tpu.memory_space<vmem>>, vector<16x128xf32>,
    return
  }
  func.func @transform_0(%arg0: i32, %arg1: i32) -> (i32, i32) {
    %c0_i32 = arith.constant 0 : i32
    %c0_i32_0 = arith.constant 0 : i32
    return %arg0, %c0_i32 : i32, i32
  }
  func.func @transform_1(%arg0: i32, %arg1: i32) -> (i32, i32) {
    %c0_i32 = arith.constant 0 : i32
    %c0_i32_0 = arith.constant 0 : i32
    return %c0_i32, %arg1 : i32, i32
  }
  func.func @transform_2(%arg0: i32, %arg1: i32) -> (i32, i32) {
    %c0_i32 = arith.constant 0 : i32
    return %arg0, %arg1 : i32, i32
  }
}

</mosaic_0001>

<llo_original>
// kernel: tpu_custom_call.1
$region0: #{tpu_custom_call.1}
  #allocation0 [shape = 'u32[]', space=smem, size = 0x4, offset = 0x4, fixed_abs, tag = 'smem constant byte address 0x4 - core index']
  #allocation1 [shape = 'u32[144,128]{1,0:T(1,128)}', space=vmem, size = 0x12000, scoped, tag = 'internal scratch']
  %s0 = inlined_call_operand.hbm [shape: f32[16,32], index: 0, kind: input, shape index: {}]
  %s1 = inlined_call_operand.hbm [shape: f32[32,128], index: 1, kind: input, shape index: {}]
  %s2 = inlined_call_operand.hbm [shape: f32[16,128], index: 2, kind: output, shape index: {}]
  %s3 = sld [smem:[#allocation0]]
  $region26: #{tpu_custom_call.1} parent=0
    _
  %s5 = ssub.s32 1, %s3
  %s6 = scalar_select 0, %s5, %s3
  $region1: #{tpu_custom_call.1} parent=0
    #allocation2 [shape = 'u8[8192]{0}', space=vmem, size = 0x2000, scoped, tag = 'input window, operand 0, single buffered']
    #allocation3 [shape = 's32[1]{0}', space=sflag, size = 0x4, scoped, tag = 'scoped memory for tpu_custom_call.1']
    #allocation4 [shape = 's32[1]{0}', space=sflag, size = 0x4, scoped, tag = 'scoped memory for tpu_custom_call.1']
    #allocation5 [shape = 'u8[16384]{0}', space=vmem, size = 0x4000, scoped, tag = 'input window, operand 1, single buffered']
    #allocation6 [shape = 's32[1]{0}', space=sflag, size = 0x4, scoped, tag = 'scoped memory for tpu_custom_call.1']
    #allocation7 [shape = 'u8[8192]{0}', space=vmem, size = 0x2000, scoped, tag = 'output window, operand 0, single buffered']
    %7 = vsyncpa [#allocation3], 0
    %8 = vsyncpa [#allocation6], 0
    %9 = vsyncpa [#allocation4], 0
    // Predicated region
    $region2: #{tpu_custom_call.1} parent=1 // pred_check
      _
    $region3: #{tpu_custom_call.1} parent=1 // pred_check_branch
      %11 = sbr.rel (0) target = $region5
    $region4: #{tpu_custom_call.1} parent=1 // pred_region
      %s13 = ssub.s32 256, 256
      %14 = vsyncadd [#allocation3], %s13
      %s15 = sshll.u32 [#allocation2], 4
      %s16 = int_to_ptr.vmem [resolvable:$true] %s15
      %21 = dma.hbm_to_vmem [thread:$0]  %s0, 256, %s16, [#allocation3], 128, 128, 8
    $region5: #{tpu_custom_call.1} parent=1 // pred_fallthru
      _
    // Predicated region
    $region6: #{tpu_custom_call.1} parent=1 // pred_check
      _
    $region7: #{tpu_custom_call.1} parent=1 // pred_check_branch
      %23 = sbr.rel (0) target = $region9
    $region8: #{tpu_custom_call.1} parent=1 // pred_region
      %s25 = ssub.s32 512, 512
      %26 = vsyncadd [#allocation6], %s25
      %s27 = sshll.u32 [#allocation5], 4
      %s28 = int_to_ptr.vmem [resolvable:$true] %s27
      %33 = dma.hbm_to_vmem [thread:$0]  %s1, 512, %s28, [#allocation6], 128, 128, 8
    $region9: #{tpu_custom_call.1} parent=1 // pred_fallthru
      _
    // Predicated region
    $region10: #{tpu_custom_call.1} parent=1 // pred_check
      _
    $region11: #{tpu_custom_call.1} parent=1 // pred_check_branch
      %35 = sbr.rel (0) target = $region13
    $region12: #{tpu_custom_call.1} parent=1 // pred_region
      %36 = dma.done [#allocation3], 256
    $region13: #{tpu_custom_call.1} parent=1 // pred_fallthru
      _
    // Predicated region
    $region14: #{tpu_custom_call.1} parent=1 // pred_check
      _
    $region15: #{tpu_custom_call.1} parent=1 // pred_check_branch
      %38 = sbr.rel (0) target = $region17
    $region16: #{tpu_custom_call.1} parent=1 // pred_region
      %39 = dma.done [#allocation6], 512
    $region17: #{tpu_custom_call.1} parent=1 // pred_fallthru
      _
    %v40 = vld [vmem:[#allocation2] sm:$0xff]
    %v41 = vld [vmem:[#allocation2 + $0x8] sm:$0xff]
    %v42 = vld [vmem:[#allocation5] sm:$0xff]
    %v43 = vld [vmem:[#allocation5 + $0x8] sm:$0xff]
    %v44 = vld [vmem:[#allocation5 + $0x10] sm:$0xff]
    %v45 = vld [vmem:[#allocation5 + $0x18] sm:$0xff]
    %vm46 = vcmask 261120
    %v48 = vsel %vm46, %v40, 0
    %v51 = vsel %vm46, %v41, 0
    %53 = vmatprep.subr.mxu0 0.0
    %54 = vmatpush1.msra.mxu0 %v42
    %55 = vmatprep.subr.mxu0 0.0
    %56 = vmatpush1.msra.mxu0 %v43
    %57 = vmatprep.subr.mxu0 0.0
    %58 = vmatpush1.msra.mxu0 %v44
    %59 = vmatprep.subr.mxu0 0.0
    %60 = vmatpush1.msra.mxu0 %v45
    %61 = vmatprep.subr.mxu0 0.0
    %62 = vmatpush1.msra.mxu0 0.0
    %63 = vmatprep.subr.mxu0 0.0
    %64 = vmatpush1.msra.mxu0 0.0
    %65 = vmatprep.subr.mxu0 0.0
    %66 = vmatpush1.msra.mxu0 0.0
    %67 = vmatprep.subr.mxu0 0.0
    %68 = vmatpush1.msra.mxu0 0.0
    %69 = vmatprep.subr.mxu0 0.0
    %70 = vmatpush1.msra.mxu0 0.0
    %71 = vmatprep.subr.mxu0 0.0
    %72 = vmatpush1.msra.mxu0 0.0
    %73 = vmatprep.subr.mxu0 0.0
    %74 = vmatpush1.msra.mxu0 0.0
    %75 = vmatprep.subr.mxu0 0.0
    %76 = vmatpush1.msra.mxu0 0.0
    %77 = vmatprep.subr.mxu0 0.0
    %78 = vmatpush1.msra.mxu0 0.0
    %79 = vmatprep.subr.mxu0 0.0
    %80 = vmatpush1.msra.mxu0 0.0
    %81 = vmatprep.subr.mxu0 0.0
    %82 = vmatpush1.msra.mxu0 0.0
    %83 = vmatprep.subr.mxu0 0.0
    %84 = vmatpush1.msra.mxu0 0.0
    %85 = vmatprep.subr.mxu0 0.0
    %86 = vmatpush1.msra.mxu0 0.0
    %87 = vmatprep.subr.mxu0 0.0
    %88 = vmatpush1.msra.mxu0 0.0
    %89 = vmatprep.subr.mxu0 0.0
    %90 = vmatpush1.msra.mxu0 0.0
    %91 = vmatprep.subr.mxu0 0.0
    %92 = vmatpush1.msra.mxu0 0.0
    %93 = vmatprep.subr.mxu0 0.0
    %94 = vmatpush1.msra.mxu0 0.0
    %95 = vmatprep.subr.mxu0 0.0
    %96 = vmatpush1.msra.mxu0 0.0
    %97 = vmatprep.subr.mxu0 0.0
    %98 = vmatpush1.msra.mxu0 0.0
    %99 = vmatprep.subr.mxu0 0.0
    %100 = vmatpush1.msra.mxu0 0.0
    %101 = vmatprep.subr.mxu0 0.0
    %102 = vmatpush1.msra.mxu0 0.0
    %103 = vmatprep.subr.mxu0 0.0
    %104 = vmatpush1.msra.mxu0 0.0
    %105 = vmatprep.subr.mxu0 0.0
    %106 = vmatpush1.msra.mxu0 0.0
    %107 = vmatprep.subr.mxu0 0.0
    %108 = vmatpush1.msra.mxu0 0.0
    %109 = vmatprep.subr.mxu0 0.0
    %110 = vmatpush1.msra.mxu0 0.0
    %111 = vmatprep.subr.mxu0 0.0
    %112 = vmatpush1.msra.mxu0 0.0
    %113 = vmatprep.subr.mxu0 0.0
    %114 = vmatpush1.msra.mxu0 0.0
    %115 = vmatprep.subr.mxu0 0.0
    %116 = vmatpush1.msra.mxu0 0.0
    %117 = vmatprep.mubr.f32.mxu0 0.0
    %118 = vmatmul.mubr.f32.gmra.mrb[0].mxu0 %v48
    %v119 = vpop.f32.mrb[0].mxu0
    %v120 = vadd.f32 0.0, %v119
    %v121 = vpop.f32.mrb[0].mxu0
    %122 = vmatprep.mubr.f32.mxu0 0.0
    %123 = vmatmul.mubr.f32.gmra.mrb[0].mxu0 %v51
    %v124 = vpop.f32.mrb[0].mxu0
    %v125 = vadd.f32 0.0, %v124
    %v126 = vpop.f32.mrb[0].mxu0
    %127 = vdwg.mxu0
    %128 = vst [vmem:[#allocation7] sm:$0xff] %v120
    %129 = vst [vmem:[#allocation7 + $0x8] sm:$0xff] %v125
    // Predicated region
    $region18: #{tpu_custom_call.1} parent=1 // pred_check
      _
    $region19: #{tpu_custom_call.1} parent=1 // pred_check_branch
      %131 = sbr.rel (0) target = $region21
    $region20: #{tpu_custom_call.1} parent=1 // pred_region
      %s133 = ssub.s32 256, 256
      %134 = vsyncadd [#allocation4], %s133
      %s135 = sshll.u32 [#allocation7], 4
      %s136 = int_to_ptr.vmem [resolvable:$true] %s135
      %141 = dma.vmem_to_hbm [thread:$0]  %s136, 256, %s2, [#allocation4], 128, 128, 8
    $region21: #{tpu_custom_call.1} parent=1 // pred_fallthru
      _
    // Predicated region
    $region22: #{tpu_custom_call.1} parent=1 // pred_check
      _
    $region23: #{tpu_custom_call.1} parent=1 // pred_check_branch
      %143 = sbr.rel (0) target = $region25
    $region24: #{tpu_custom_call.1} parent=1 // pred_region
      %144 = dma.done [#allocation4], 256
    $region25: #{tpu_custom_call.1} parent=1 // pred_fallthru
      _
    %145 = vsyncpa [#allocation3], 1
    %146 = vsyncpa [#allocation6], 1
    %147 = vsyncpa [#allocation4], 1

// kernel: tpu_custom_call.1
$region0: #{tpu_custom_call.1}
  #allocation0 [shape = 'u32[]', space=smem, size = 0x4, offset = 0x4, fixed_abs, tag = 'smem constant byte address 0x4 - core index']
  #allocation1 [shape = 'u32[144,128]{1,0:T(1,128)}', space=vmem, size = 0x12000, scoped, tag = 'internal scratch']
  %s0 = inlined_call_operand.hbm [shape: f32[16,32], index: 0, kind: input, shape index: {}]
  %s1 = inlined_call_operand.hbm [shape: f32[32,128], index: 1, kind: input, shape index: {}]
  %s2 = inlined_call_operand.hbm [shape: f32[16,128], index: 2, kind: output, shape index: {}]
  %s3 = sld [smem:[#allocation0]]
  $region26: #{tpu_custom_call.1} parent=0
    _
  %s5 = ssub.s32 1, %s3
  %s6 = scalar_select 0, %s5, %s3
  $region1: #{tpu_custom_call.1} parent=0
    #allocation2 [shape = 'u8[8192]{0}', space=vmem, size = 0x2000, scoped, tag = 'input window, operand 0, single buffered']
    #allocation3 [shape = 's32[1]{0}', space=sflag, size = 0x4, scoped, tag = 'scoped memory for tpu_custom_call.1']
    #allocation4 [shape = 's32[1]{0}', space=sflag, size = 0x4, scoped, tag = 'scoped memory for tpu_custom_call.1']
    #allocation5 [shape = 'u8[16384]{0}', space=vmem, size = 0x4000, scoped, tag = 'input window, operand 1, single buffered']
    #allocation6 [shape = 's32[1]{0}', space=sflag, size = 0x4, scoped, tag = 'scoped memory for tpu_custom_call.1']
    #allocation7 [shape = 'u8[8192]{0}', space=vmem, size = 0x2000, scoped, tag = 'output window, operand 0, single buffered']
    %7 = vsyncpa [#allocation3], 0
    %8 = vsyncpa [#allocation6], 0
    %9 = vsyncpa [#allocation4], 0
    // Predicated region
    $region2: #{tpu_custom_call.1} parent=1 // pred_check
      _
    $region3: #{tpu_custom_call.1} parent=1 // pred_check_branch
      %11 = sbr.rel (0) target = $region5
    $region4: #{tpu_custom_call.1} parent=1 // pred_region
      %s13 = ssub.s32 256, 256
      %14 = vsyncadd [#allocation3], %s13
      %s15 = sshll.u32 [#allocation2], 4
      %s16 = int_to_ptr.vmem [resolvable:$true] %s15
      %21 = dma.hbm_to_vmem [thread:$0]  %s0, 256, %s16, [#allocation3], 128, 128, 8
    $region5: #{tpu_custom_call.1} parent=1 // pred_fallthru
      _
    // Predicated region
    $region6: #{tpu_custom_call.1} parent=1 // pred_check
      _
    $region7: #{tpu_custom_call.1} parent=1 // pred_check_branch
      %23 = sbr.rel (0) target = $region9
    $region8: #{tpu_custom_call.1} parent=1 // pred_region
      %s25 = ssub.s32 512, 512
      %26 = vsyncadd [#allocation6], %s25
      %s27 = sshll.u32 [#allocation5], 4
      %s28 = int_to_ptr.vmem [resolvable:$true] %s27
      %33 = dma.hbm_to_vmem [thread:$0]  %s1, 512, %s28, [#allocation6], 128, 128, 8
    $region9: #{tpu_custom_call.1} parent=1 // pred_fallthru
      _
    // Predicated region
    $region10: #{tpu_custom_call.1} parent=1 // pred_check
      _
    $region11: #{tpu_custom_call.1} parent=1 // pred_check_branch
      %35 = sbr.rel (0) target = $region13
    $region12: #{tpu_custom_call.1} parent=1 // pred_region
      %36 = dma.done [#allocation3], 256
    $region13: #{tpu_custom_call.1} parent=1 // pred_fallthru
      _
    // Predicated region
    $region14: #{tpu_custom_call.1} parent=1 // pred_check
      _
    $region15: #{tpu_custom_call.1} parent=1 // pred_check_branch
      %38 = sbr.rel (0) target = $region17
    $region16: #{tpu_custom_call.1} parent=1 // pred_region
      %39 = dma.done [#allocation6], 512
    $region17: #{tpu_custom_call.1} parent=1 // pred_fallthru
      _
    %v40 = vld [vmem:[#allocation2] sm:$0xff]
    %v41 = vld [vmem:[#allocation2 + $0x8] sm:$0xff]
    %v42 = vld [vmem:[#allocation5] sm:$0xff]
    %v43 = vld [vmem:[#allocation5 + $0x8] sm:$0xff]
    %v44 = vld [vmem:[#allocation5 + $0x10] sm:$0xff]
    %v45 = vld [vmem:[#allocation5 + $0x18] sm:$0xff]
    %vm46 = vcmask 261120
    %v48 = vsel %vm46, %v40, 0
    %v51 = vsel %vm46, %v41, 0
    %53 = vmatprep.subr.mxu0 0.0
    %54 = vmatpush1.msra.mxu0 %v42
    %55 = vmatprep.subr.mxu0 0.0
    %56 = vmatpush1.msra.mxu0 %v43
    %57 = vmatprep.subr.mxu0 0.0
    %58 = vmatpush1.msra.mxu0 %v44
    %59 = vmatprep.subr.mxu0 0.0
    %60 = vmatpush1.msra.mxu0 %v45
    %61 = vmatprep.subr.mxu0 0.0
    %62 = vmatpush1.msra.mxu0 0.0
    %63 = vmatprep.subr.mxu0 0.0
    %64 = vmatpush1.msra.mxu0 0.0
    %65 = vmatprep.subr.mxu0 0.0
    %66 = vmatpush1.msra.mxu0 0.0
    %67 = vmatprep.subr.mxu0 0.0
    %68 = vmatpush1.msra.mxu0 0.0
    %69 = vmatprep.subr.mxu0 0.0
    %70 = vmatpush1.msra.mxu0 0.0
    %71 = vmatprep.subr.mxu0 0.0
    %72 = vmatpush1.msra.mxu0 0.0
    %73 = vmatprep.subr.mxu0 0.0
    %74 = vmatpush1.msra.mxu0 0.0
    %75 = vmatprep.subr.mxu0 0.0
    %76 = vmatpush1.msra.mxu0 0.0
    %77 = vmatprep.subr.mxu0 0.0
    %78 = vmatpush1.msra.mxu0 0.0
    %79 = vmatprep.subr.mxu0 0.0
    %80 = vmatpush1.msra.mxu0 0.0
    %81 = vmatprep.subr.mxu0 0.0
    %82 = vmatpush1.msra.mxu0 0.0
    %83 = vmatprep.subr.mxu0 0.0
    %84 = vmatpush1.msra.mxu0 0.0
    %85 = vmatprep.subr.mxu0 0.0
    %86 = vmatpush1.msra.mxu0 0.0
    %87 = vmatprep.subr.mxu0 0.0
    %88 = vmatpush1.msra.mxu0 0.0
    %89 = vmatprep.subr.mxu0 0.0
    %90 = vmatpush1.msra.mxu0 0.0
    %91 = vmatprep.subr.mxu0 0.0
    %92 = vmatpush1.msra.mxu0 0.0
    %93 = vmatprep.subr.mxu0 0.0
    %94 = vmatpush1.msra.mxu0 0.0
    %95 = vmatprep.subr.mxu0 0.0
    %96 = vmatpush1.msra.mxu0 0.0
    %97 = vmatprep.subr.mxu0 0.0
    %98 = vmatpush1.msra.mxu0 0.0
    %99 = vmatprep.subr.mxu0 0.0
    %100 = vmatpush1.msra.mxu0 0.0
    %101 = vmatprep.subr.mxu0 0.0
    %102 = vmatpush1.msra.mxu0 0.0
    %103 = vmatprep.subr.mxu0 0.0
    %104 = vmatpush1.msra.mxu0 0.0
    %105 = vmatprep.subr.mxu0 0.0
    %106 = vmatpush1.msra.mxu0 0.0
    %107 = vmatprep.subr.mxu0 0.0
    %108 = vmatpush1.msra.mxu0 0.0
    %109 = vmatprep.subr.mxu0 0.0
    %110 = vmatpush1.msra.mxu0 0.0
    %111 = vmatprep.subr.mxu0 0.0
    %112 = vmatpush1.msra.mxu0 0.0
    %113 = vmatprep.subr.mxu0 0.0
    %114 = vmatpush1.msra.mxu0 0.0
    %115 = vmatprep.subr.mxu0 0.0
    %116 = vmatpush1.msra.mxu0 0.0
    %117 = vmatprep.mubr.f32.mxu0 0.0
    %118 = vmatmul.mubr.f32.gmra.mrb[0].mxu0 %v48
    %v119 = vpop.f32.mrb[0].mxu0
    %v120 = vadd.f32 0.0, %v119
    %v121 = vpop.f32.mrb[0].mxu0
    %122 = vmatprep.mubr.f32.mxu0 0.0
    %123 = vmatmul.mubr.f32.gmra.mrb[0].mxu0 %v51
    %v124 = vpop.f32.mrb[0].mxu0
    %v125 = vadd.f32 0.0, %v124
    %v126 = vpop.f32.mrb[0].mxu0
    %127 = vdwg.mxu0
    %128 = vst [vmem:[#allocation7] sm:$0xff] %v120
    %129 = vst [vmem:[#allocation7 + $0x8] sm:$0xff] %v125
    // Predicated region
    $region18: #{tpu_custom_call.1} parent=1 // pred_check
      _
    $region19: #{tpu_custom_call.1} parent=1 // pred_check_branch
      %131 = sbr.rel (0) target = $region21
    $region20: #{tpu_custom_call.1} parent=1 // pred_region
      %s133 = ssub.s32 256, 256
      %134 = vsyncadd [#allocation4], %s133
      %s135 = sshll.u32 [#allocation7], 4
      %s136 = int_to_ptr.vmem [resolvable:$true] %s135
      %141 = dma.vmem_to_hbm [thread:$0]  %s136, 256, %s2, [#allocation4], 128, 128, 8
    $region21: #{tpu_custom_call.1} parent=1 // pred_fallthru
      _
    // Predicated region
    $region22: #{tpu_custom_call.1} parent=1 // pred_check
      _
    $region23: #{tpu_custom_call.1} parent=1 // pred_check_branch
      %143 = sbr.rel (0) target = $region25
    $region24: #{tpu_custom_call.1} parent=1 // pred_region
      %144 = dma.done [#allocation4], 256
    $region25: #{tpu_custom_call.1} parent=1 // pred_fallthru
      _
    %145 = vsyncpa [#allocation3], 1
    %146 = vsyncpa [#allocation6], 1
    %147 = vsyncpa [#allocation4], 1

</llo_original>
